<compile_context>
chip_gen: v6e
topology: v6e:2x2x1
jax: 0.10.0
libtpu: 0.0.40
codegen_flags: <defaults>
</compile_context>

<pallas_src>
import functools

import jax
import jax.numpy as jnp
from jax import lax
from jax.experimental import pallas as pl
from jax.experimental.pallas import tpu as pltpu

_LANES = 128
_ACC_ROWS = 8                    # one f32 vreg worth of sublanes (accumulator slab)
_CHUNK_ROWS = 512                # per-chunk compute window (bounds VMEM temps)
_TARGET_BLOCK_BYTES = 4 << 20    # ~4 MiB per input per pipeline buffer


def _round_up(a, b):
    return ((a + b - 1) // b) * b


def _recon_sum_kernel(x_ref, y_ref, o_ref, *, use_l2, block_rows, chunk_rows,
                      blocks_per_part, total_rows, first_masked_block,
                      any_masked):
    """Accumulates sum of (x-y)^2 (L2) or |x-y| (L1) into an (8,128) slab."""
    c = pl.program_id(0)   # partition (dual TensorCore shard on v7x)
    i = pl.program_id(1)   # reduction step within this partition

    @pl.when(i == 0)
    def _():
        o_ref[...] = jnp.zeros_like(o_ref)

    block_idx = c * blocks_per_part + i          # logical (unclamped) block index
    n_chunks = block_rows // chunk_rows

    def accumulate(masked):
        def body(j, acc):
            r0 = pl.multiple_of(j * chunk_rows, chunk_rows)
            xd = x_ref[pl.ds(r0, chunk_rows), :].astype(jnp.float32)
            yd = y_ref[pl.ds(r0, chunk_rows), :].astype(jnp.float32)
            d = xd - yd
            v = d * d if use_l2 else jnp.abs(d)
            if masked:
                row_ids = (block_idx * block_rows + j * chunk_rows
                           + lax.broadcasted_iota(jnp.int32,
                                                  (chunk_rows, _LANES), 0))
                # Select (NOT multiply): out-of-range rows may hold NaN/Inf.
                v = jnp.where(row_ids < total_rows, v, 0.0)
            # Sublane fold: (chunk_rows,128) -> (chunk_rows//8, 8, 128) -> sum.
            folded = v.reshape(chunk_rows // _ACC_ROWS, _ACC_ROWS, _LANES).sum(axis=0)
            return acc + folded

        return lax.fori_loop(0, n_chunks, body,
                             jnp.zeros((_ACC_ROWS, _LANES), jnp.float32),
                             unroll=True)

    if not any_masked:
        o_ref[...] += accumulate(masked=False)
    elif first_masked_block <= 0:
        # Only one (partial) block exists: masking is always needed.
        o_ref[...] += accumulate(masked=True)
    else:
        # Hot path: full blocks, no mask cost.
        @pl.when(block_idx < first_masked_block)
        def _():
            o_ref[...] += accumulate(masked=False)

        # Cold path: final partial block and/or duplicated overshoot block.
        @pl.when(block_idx >= first_masked_block)
        def _():
            o_ref[...] += accumulate(masked=True)


def reconstruction_loss(x, y, loss_fct: str = "L2", eps: float = 1e-10):
    """Equivalent of ReconstructionLoss(loss_fct)(x, y): eps + mean_loss(x, y)."""
    if x.shape != y.shape:
        raise ValueError("x and y must have the same shape")
    lf = loss_fct.upper()
    if lf not in ("L1", "L2"):
        raise ValueError(f"Invalid loss function: {loss_fct}. Choose from ['L1', 'L2'].")
    use_l2 = (lf == "L2")

    n = x.size
    xf = x.reshape(-1)
    yf = y.reshape(-1)

    rows = n // _LANES
    n_main = rows * _LANES

    def elem_loss(a, b):
        d = a.astype(jnp.float32) - b.astype(jnp.float32)
        return d * d if use_l2 else jnp.abs(d)

    # Lane tail (< 128 elements): tiny wrapper-side reduce; no full-array pad copy.
    if n_main < n:
        tail = jnp.sum(elem_loss(xf[n_main:], yf[n_main:]))
    else:
        tail = jnp.float32(0.0)

    if rows == 0:
        total = tail
    else:
        x2 = xf[:n_main].reshape(rows, _LANES)
        y2 = yf[:n_main].reshape(rows, _LANES)

        min_item = max(1, min(x.dtype.itemsize, y.dtype.itemsize))
        max_item = max(1, max(x.dtype.itemsize, y.dtype.itemsize))
        pack = max(_ACC_ROWS, 32 // min_item)   # sublane packing granularity

        if rows >= _CHUNK_ROWS:
            chunk_rows = _CHUNK_ROWS
            desired = max(chunk_rows,
                          (_TARGET_BLOCK_BYTES // (_LANES * max_item))
                          // chunk_rows * chunk_rows)
            block_rows = min(desired, _round_up(rows, chunk_rows))
        else:
            block_rows = _round_up(rows, pack)
            chunk_rows = block_rows

        num_blocks = pl.cdiv(rows, block_rows)
        # Unconditional 2-way split (dual TensorCore on v7x; no-op on v5e/v6e).
        num_parts = 2 if num_blocks >= 2 else 1
        bpp = pl.cdiv(num_blocks, num_parts)
        total_grid_blocks = num_parts * bpp

        last_partial = (rows % block_rows) != 0
        first_masked_block = (num_blocks - 1) if last_partial else num_blocks
        any_masked = first_masked_block < total_grid_blocks

        kernel = functools.partial(
            _recon_sum_kernel,
            use_l2=use_l2,
            block_rows=block_rows,
            chunk_rows=chunk_rows,
            blocks_per_part=bpp,
            total_rows=rows,
            first_masked_block=first_masked_block,
            any_masked=any_masked,
        )

        def in_map(c, i):
            # Clamp: the overshoot block (odd num_blocks, 2-way split) re-reads
            # the last real block; its contribution is zeroed by the row mask.
            return (jnp.minimum(c * bpp + i, num_blocks - 1), 0)

        bytes_accessed = (n_main * (x.dtype.itemsize + y.dtype.itemsize)
                          + num_parts * _ACC_ROWS * _LANES * 4)

        partials = pl.pallas_call(
            kernel,
            out_shape=jax.ShapeDtypeStruct((num_parts, _ACC_ROWS, _LANES),
                                           jnp.float32),
            grid_spec=pltpu.PrefetchScalarGridSpec(
                num_scalar_prefetch=0,
                grid=(num_parts, bpp),
                in_specs=[
                    pl.BlockSpec((block_rows, _LANES), in_map),
                    pl.BlockSpec((block_rows, _LANES), in_map),
                ],
                out_specs=pl.BlockSpec((1, _ACC_ROWS, _LANES),
                                       lambda c, i: (c, 0, 0)),
            ),
            compiler_params=pltpu.CompilerParams(
                dimension_semantics=("parallel", "arbitrary"),
                # 32 MiB: safe on v5e/v6e (128 MiB) and v7x (64 MiB physical);
                # holds 2 inputs x 2 buffers x 4 MiB plus chunk-sized temps.
                vmem_limit_bytes=32 * 1024 * 1024,
            ),
            cost_estimate=pl.CostEstimate(
                flops=3 * n_main,
                transcendentals=0,
                bytes_accessed=int(bytes_accessed),
            ),
        )(x2, y2)

        total = jnp.sum(partials) + tail

    return jnp.float32(eps) + total / jnp.float32(n)


if __name__ == "__main__":
    key = jax.random.PRNGKey(0)
    kx, ky = jax.random.split(key)

    # NCHW-like shapes, consistent with an image-reconstruction loss.
    x = jax.random.normal(kx, (2, 4, 16, 16), dtype=jnp.float32)
    y = jax.random.normal(ky, (2, 4, 16, 16), dtype=jnp.float32)

    l2 = jax.block_until_ready(reconstruction_loss(x, y, "L2"))
    l1 = jax.block_until_ready(reconstruction_loss(x, y, "L1"))
    ref_l2 = 1e-10 + jnp.mean((x - y) ** 2)
    ref_l1 = 1e-10 + jnp.mean(jnp.abs(x - y))
    assert jnp.allclose(l2, ref_l2, rtol=1e-5, atol=1e-6), (l2, ref_l2)
    assert jnp.allclose(l1, ref_l1, rtol=1e-5, atol=1e-6), (l1, ref_l1)

    # Ragged shape: exercises the lane-tail (wrapper jnp reduce) + in-kernel
    # row-mask path on a single partial block (no full-array pad copy).
    kx2, ky2 = jax.random.split(ky)
    xr = jax.random.normal(kx2, (2, 3, 17, 13), dtype=jnp.float32)
    yr = jax.random.normal(ky2, (2, 3, 17, 13), dtype=jnp.float32)
    l2r = jax.block_until_ready(reconstruction_loss(xr, yr, "L2"))
    ref_l2r = 1e-10 + jnp.mean((xr - yr) ** 2)
    assert jnp.allclose(l2r, ref_l2r, rtol=1e-5, atol=1e-6), (l2r, ref_l2r)

    # bf16 inputs: no wrapper cast, f32 cast happens per chunk inside the kernel.
    xb = x.astype(jnp.bfloat16)
    yb = y.astype(jnp.bfloat16)
    l1b = jax.block_until_ready(reconstruction_loss(xb, yb, "L1"))
    ref_l1b = 1e-10 + jnp.mean(
        jnp.abs(xb.astype(jnp.float32) - yb.astype(jnp.float32)))
    assert jnp.allclose(l1b, ref_l1b, rtol=1e-4, atol=1e-5), (l1b, ref_l1b)

    # Even multi-block case: exercises the unconditional 2-way partition path.
    kx3, ky3 = jax.random.split(kx2)
    xm = jax.random.normal(kx3, (4, 8, 256, 256), dtype=jnp.float32)
    ym = jax.random.normal(ky3, (4, 8, 256, 256), dtype=jnp.float32)
    l2m = jax.block_until_ready(reconstruction_loss(xm, ym, "L2"))
    ref_l2m = 1e-10 + jnp.mean((xm - ym) ** 2)
    assert jnp.allclose(l2m, ref_l2m, rtol=1e-5, atol=1e-6), (l2m, ref_l2m)

    # Odd block count + partial last block: exercises the clamped overshoot
    # block and the pl.when-gated mask branches.
    kx4, ky4 = jax.random.split(ky3)
    xo = jax.random.normal(kx4, (25, 320, 320), dtype=jnp.float32)
    yo = jax.random.normal(ky4, (25, 320, 320), dtype=jnp.float32)
    l1o = jax.block_until_ready(reconstruction_loss(xo, yo, "L1"))
    ref_l1o = 1e-10 + jnp.mean(jnp.abs(xo - yo))
    assert jnp.allclose(l1o, ref_l1o, rtol=1e-5, atol=1e-6), (l1o, ref_l1o)

    print("KERNEL_OK")
</pallas_src>

<mosaic_0001>
module attributes {stable_mosaic.version = 11 : i64} {
  func.func @_recon_sum_kernel(%arg0: i32, %arg1: i32, %arg2: memref<16x128xf32, #tpu.memory_space<vmem>>, %arg3: memref<16x128xf32, #tpu.memory_space<vmem>>, %arg4: memref<1x8x128xf32, #tpu.memory_space<vmem>>) attributes {dimension_semantics = [#tpu.dimension_semantics<parallel>, #tpu.dimension_semantics<arbitrary>], iteration_bounds = array<i64: 1, 1>, scalar_prefetch = 0 : i64, scratch_operands = 0 : i64, tpu.core_type = #tpu.core_type<tc>, window_params = [{transform_indices = @transform_0, window_bounds = array<i64: 16, 128>}, {transform_indices = @transform_1, window_bounds = array<i64: 16, 128>}, {transform_indices = @transform_2, window_bounds = array<i64: 1, 8, 128>}]} {
    %c0_i32 = arith.constant 0 : i32
    %0 = arith.cmpi eq, %arg1, %c0_i32 : i32
    %1 = arith.extui %0 : i1 to i32
    %c0_i32_0 = arith.constant 0 : i32
    %2 = arith.cmpi ne, %1, %c0_i32_0 : i32
    scf.if %2 {
      %cst_10 = arith.constant 0.000000e+00 : f32
      %19 = vector.broadcast %cst_10 : f32 to vector<1x8x128xf32>
      %c0_11 = arith.constant 0 : index
      %c0_12 = arith.constant 0 : index
      %c0_13 = arith.constant 0 : index
      %20 = vector.load %arg4[%c0_11, %c0_12, %c0_13] : memref<1x8x128xf32, #tpu.memory_space<vmem>>, vector<1x8x128xf32>
      tpu.vector_store %arg4[%c0_11, %c0_12, %c0_13], %19 {strides = array<i32>} : memref<1x8x128xf32, #tpu.memory_space<vmem>>, vector<1x8x128xf32>,
    } else {
    }
    %c0 = arith.constant 0 : index
    %c0_1 = arith.constant 0 : index
    %c0_2 = arith.constant 0 : index
    %3 = vector.load %arg4[%c0, %c0_1, %c0_2] : memref<1x8x128xf32, #tpu.memory_space<vmem>>, vector<1x8x128xf32>
    %cst = arith.constant 0.000000e+00 : f32
    %4 = vector.broadcast %cst : f32 to vector<8x128xf32>
    %c0_i32_3 = arith.constant 0 : i32
    %c16_i32 = arith.constant 16 : i32
    %5 = arith.muli %c0_i32_3, %c16_i32 : i32
    %6 = tpu.assume_multiple %5, 16 : i32
    %7 = arith.index_cast %6 : i32 to index
    %c0_4 = arith.constant 0 : index
    %8 = vector.load %arg2[%7, %c0_4] : memref<16x128xf32, #tpu.memory_space<vmem>>, vector<16x128xf32>
    %9 = arith.index_cast %6 : i32 to index
    %c0_5 = arith.constant 0 : index
    %10 = vector.load %arg3[%9, %c0_5] : memref<16x128xf32, #tpu.memory_space<vmem>>, vector<16x128xf32>
    %11 = arith.subf %8, %10 : vector<16x128xf32>
    %12 = arith.mulf %11, %11 : vector<16x128xf32>
    %13 = vector.shape_cast %12 : vector<16x128xf32> to vector<2x8x128xf32>
    %cst_6 = arith.constant dense<0.000000e+00> : vector<8x128xf32>
    %14 = vector.multi_reduction <add>, %13, %cst_6 [0] : vector<2x8x128xf32> to vector<8x128xf32>
    %15 = arith.addf %4, %14 : vector<8x128xf32>
    %c1_i32 = arith.constant 1 : i32
    %16 = vector.shape_cast %15 : vector<8x128xf32> to vector<1x8x128xf32>
    %17 = arith.addf %3, %16 : vector<1x8x128xf32>
    %c0_7 = arith.constant 0 : index
    %c0_8 = arith.constant 0 : index
    %c0_9 = arith.constant 0 : index
    %18 = vector.load %arg4[%c0_7, %c0_8, %c0_9] : memref<1x8x128xf32, #tpu.memory_space<vmem>>, vector<1x8x128xf32>
    tpu.vector_store %arg4[%c0_7, %c0_8, %c0_9], %17 {strides = array<i32>} : memref<1x8x128xf32, #tpu.memory_space<vmem>>, vector<1x8x128xf32>,
    return
  }
  func.func @transform_0(%arg0: i32, %arg1: i32) -> (i32, i32) {
    %c1_i32 = arith.constant 1 : i32
    %0 = arith.muli %arg0, %c1_i32 : i32
    %1 = arith.addi %0, %arg1 : i32
    %c0_i32 = arith.constant 0 : i32
    %2 = arith.minsi %1, %c0_i32 : i32
    %c0_i32_0 = arith.constant 0 : i32
    %c0_i32_1 = arith.constant 0 : i32
    return %2, %c0_i32_0 : i32, i32
  }
  func.func @transform_1(%arg0: i32, %arg1: i32) -> (i32, i32) {
    %c1_i32 = arith.constant 1 : i32
    %0 = arith.muli %arg0, %c1_i32 : i32
    %1 = arith.addi %0, %arg1 : i32
    %c0_i32 = arith.constant 0 : i32
    %2 = arith.minsi %1, %c0_i32 : i32
    %c0_i32_0 = arith.constant 0 : i32
    %c0_i32_1 = arith.constant 0 : i32
    return %2, %c0_i32_0 : i32, i32
  }
  func.func @transform_2(%arg0: i32, %arg1: i32) -> (i32, i32, i32) {
    %c0_i32 = arith.constant 0 : i32
    %c0_i32_0 = arith.constant 0 : i32
    %c0_i32_1 = arith.constant 0 : i32
    return %arg0, %c0_i32, %c0_i32_0 : i32, i32, i32
  }
}

</mosaic_0001>

<llo_original>
// kernel: tpu_custom_call.1
$region0: #{tpu_custom_call.1}
  #allocation0 [shape = 'u32[]', space=smem, size = 0x4, offset = 0x4, fixed_abs, tag = 'smem constant byte address 0x4 - core index']
  #allocation1 [shape = 'u32[144,128]{1,0:T(1,128)}', space=vmem, size = 0x12000, scoped, tag = 'internal scratch']
  %s0 = inlined_call_operand.hbm [shape: f32[16,128], index: 0, kind: input, shape index: {}]
  %s1 = inlined_call_operand.hbm [shape: f32[16,128], index: 1, kind: input, shape index: {}]
  %s2 = inlined_call_operand.hbm [shape: f32[1,8,128], index: 2, kind: output, shape index: {}]
  %s3 = sld [smem:[#allocation0]]
  $region30: #{tpu_custom_call.1} parent=0
    _
  %s5 = ssub.s32 1, %s3
  %s6 = scalar_select 0, %s5, %s3
  $region1: #{tpu_custom_call.1} parent=0
    #allocation2 [shape = 'u8[8192]{0}', space=vmem, size = 0x2000, scoped, tag = 'input window, operand 0, single buffered']
    #allocation3 [shape = 's32[1]{0}', space=sflag, size = 0x4, scoped, tag = 'scoped memory for tpu_custom_call.1']
    #allocation4 [shape = 's32[1]{0}', space=sflag, size = 0x4, scoped, tag = 'scoped memory for tpu_custom_call.1']
    #allocation5 [shape = 'u8[8192]{0}', space=vmem, size = 0x2000, scoped, tag = 'input window, operand 1, single buffered']
    #allocation6 [shape = 's32[1]{0}', space=sflag, size = 0x4, scoped, tag = 'scoped memory for tpu_custom_call.1']
    #allocation7 [shape = 'u8[4096]{0}', space=vmem, size = 0x1000, scoped, tag = 'output window, operand 0, single buffered']
    %7 = vsyncpa [#allocation3], 0
    %8 = vsyncpa [#allocation6], 0
    %9 = vsyncpa [#allocation4], 0
    // Predicated region
    $region2: #{tpu_custom_call.1} parent=1 // pred_check
      _
    $region3: #{tpu_custom_call.1} parent=1 // pred_check_branch
      %11 = sbr.rel (0) target = $region5
    $region4: #{tpu_custom_call.1} parent=1 // pred_region
      %s12 = sadd.s32 0, 0
      %p13 = scmp.lt.s32.totalorder %s12, 0
      %s14 = scalar_select %p13, %s12, 0
      %s15 = smul.u32 2, %s14
      %s17 = ssub.s32 256, 256
      %18 = vsyncadd [#allocation3], %s17
      %s19 = smul.addr %s15, 128
      %s20 = scalar_lea.hbm %s0, %s19
      %s21 = sshll.u32 [#allocation2], 4
      %s22 = int_to_ptr.vmem [resolvable:$true] %s21
      %27 = dma.hbm_to_vmem [thread:$0]  %s20, 256, %s22, [#allocation3], 128, 128, 8
    $region5: #{tpu_custom_call.1} parent=1 // pred_fallthru
      _
    // Predicated region
    $region6: #{tpu_custom_call.1} parent=1 // pred_check
      _
    $region7: #{tpu_custom_call.1} parent=1 // pred_check_branch
      %29 = sbr.rel (0) target = $region9
    $region8: #{tpu_custom_call.1} parent=1 // pred_region
      %s30 = sadd.s32 0, 0
      %p31 = scmp.lt.s32.totalorder %s30, 0
      %s32 = scalar_select %p31, %s30, 0
      %s33 = smul.u32 2, %s32
      %s35 = ssub.s32 256, 256
      %36 = vsyncadd [#allocation6], %s35
      %s37 = smul.addr %s33, 128
      %s38 = scalar_lea.hbm %s1, %s37
      %s39 = sshll.u32 [#allocation5], 4
      %s40 = int_to_ptr.vmem [resolvable:$true] %s39
      %45 = dma.hbm_to_vmem [thread:$0]  %s38, 256, %s40, [#allocation6], 128, 128, 8
    $region9: #{tpu_custom_call.1} parent=1 // pred_fallthru
      _
    // Predicated region
    $region10: #{tpu_custom_call.1} parent=1 // pred_check
      _
    $region11: #{tpu_custom_call.1} parent=1 // pred_check_branch
      %47 = sbr.rel (0) target = $region13
    $region12: #{tpu_custom_call.1} parent=1 // pred_region
      %48 = dma.done [#allocation3], 256
    $region13: #{tpu_custom_call.1} parent=1 // pred_fallthru
      _
    // Predicated region
    $region14: #{tpu_custom_call.1} parent=1 // pred_check
      _
    $region15: #{tpu_custom_call.1} parent=1 // pred_check_branch
      %50 = sbr.rel (0) target = $region17
    $region16: #{tpu_custom_call.1} parent=1 // pred_region
      %51 = dma.done [#allocation6], 256
    $region17: #{tpu_custom_call.1} parent=1 // pred_fallthru
      _
    %s52 = sadd.s32 0, 0
    %p53 = scmp.lt.s32.totalorder %s52, 0
    %s54 = scalar_select %p53, %s52, 0
    %s55 = smul.u32 2, %s54
    %s56 = sadd.s32 0, 0
    %p57 = scmp.lt.s32.totalorder %s56, 0
    %s58 = scalar_select %p57, %s56, 0
    %s59 = smul.u32 2, %s58
    %p60 = scmp.eq.s32.totalorder 0, 0
    // Predicated region
    $region18: #{tpu_custom_call.1} parent=1 // pred_check
      %p61 = pneg %p60
    $region19: #{tpu_custom_call.1} parent=1 // pred_check_branch
      %63 = sbr.rel (%p61) target = $region21
    $region20: #{tpu_custom_call.1} parent=1 // pred_region
      %64 = vst [vmem:[#allocation7] sm:$0xff] 0.0
    $region21: #{tpu_custom_call.1} parent=1 // pred_fallthru
      _
    %v65 = vld [vmem:[#allocation7] sm:$0xff]
    %v66 = vld [vmem:[#allocation2] sm:$0xff]
    %v67 = vld [vmem:[#allocation2 + $0x8] sm:$0xff]
    %v68 = vld [vmem:[#allocation5] sm:$0xff]
    %v69 = vld [vmem:[#allocation5 + $0x8] sm:$0xff]
    %v70 = vsub.f32 %v66, %v68
    %v71 = vsub.f32 %v67, %v69
    %v72 = vmul.f32 %v70, %v70
    %v73 = vmul.f32 %v71, %v71
    %v74 = vadd.f32 %v72, %v73
    %v75 = vadd.f32 %v74, 0.0
    %v76 = vadd.f32 %v65, %v75
    %77 = vst [vmem:[#allocation7] sm:$0xff] %v76
    // Predicated region
    $region22: #{tpu_custom_call.1} parent=1 // pred_check
      _
    $region23: #{tpu_custom_call.1} parent=1 // pred_check_branch
      %79 = sbr.rel (0) target = $region25
    $region24: #{tpu_custom_call.1} parent=1 // pred_region
      %s81 = ssub.s32 128, 128
      %82 = vsyncadd [#allocation4], %s81
      %s84 = sshll.u32 [#allocation7], 4
      %s85 = int_to_ptr.vmem [resolvable:$true] %s84
      %87 = dma.vmem_to_hbm [thread:$0]  %s85, 128, %s2, [#allocation4]
    $region25: #{tpu_custom_call.1} parent=1 // pred_fallthru
      _
    // Predicated region
    $region26: #{tpu_custom_call.1} parent=1 // pred_check
      _
    $region27: #{tpu_custom_call.1} parent=1 // pred_check_branch
      %89 = sbr.rel (0) target = $region29
    $region28: #{tpu_custom_call.1} parent=1 // pred_region
      %90 = dma.done [#allocation4], 128
    $region29: #{tpu_custom_call.1} parent=1 // pred_fallthru
      _
    %91 = vsyncpa [#allocation3], 1
    %92 = vsyncpa [#allocation6], 1
    %93 = vsyncpa [#allocation4], 1

</llo_original>
